<compile_context>
chip_gen: v7x
topology: tpu7x:2x2x1
jax: 0.10.0
libtpu: 0.0.40
codegen_flags: <defaults>
</compile_context>

<pallas_src>
import jax
import jax.numpy as jnp
from jax.experimental import pallas as pl
from jax.experimental.pallas import tpu as pltpu


# ----------------------------------------------------------------------------
# Fused kernel:  single big-K GEMM -> fused bias -> LayerNorm -> exact GELU
# ----------------------------------------------------------------------------
def _fused_embed_kernel(a_ref, wf_ref, bf_ref, g_ref, beta_ref, o_ref):
    """One (batch, row-block) grid step.

    Block shapes seen by the kernel:
      a_ref   : (1, tile_m, Kf)   folded im2col rows            (compute dtype)
      wf_ref  : (Kf, D)           folded conv1*conv2 weight     (VMEM-resident)
      bf_ref  : (1, D)            fused bias                    (fp32)
      g_ref   : (1, D)            LayerNorm gamma               (fp32)
      beta_ref: (1, D)            LayerNorm beta                (fp32)
      o_ref   : (1, tile_m, D)
    """
    # Single GEMM, fp32 accumulation on the MXU (contraction depth ~k2^2*Cin*25).
    y = jnp.dot(a_ref[0], wf_ref[...], preferred_element_type=jnp.float32)
    y = y + bf_ref[...]                                   # fused conv1+conv2 bias
    # LayerNorm over embed_dim (torch default eps=1e-5), fp32 epilogue.
    mean = jnp.mean(y, axis=-1, keepdims=True)
    var = jnp.mean(jnp.square(y - mean), axis=-1, keepdims=True)
    yn = (y - mean) * jax.lax.rsqrt(var + 1e-5)
    yn = yn * g_ref[...] + beta_ref[...]
    # Exact erf-based GELU (torch.nn.GELU default).
    out = yn * 0.5 * (1.0 + jax.lax.erf(yn * 0.7071067811865476))
    o_ref[0] = out.astype(o_ref.dtype)


# ----------------------------------------------------------------------------
# Tiling / VMEM planning (generation-aware)
# ----------------------------------------------------------------------------
def _cdiv(a, b):
    return -(-a // b)


def _round_up(x, m):
    return _cdiv(x, m) * m


def _vmem_capacity_bytes():
    try:
        return int(pltpu.get_tpu_info().vmem_capacity_bytes)
    except Exception:                      # pragma: no cover - conservative default
        return 128 * 1024 * 1024


def _pick_tile_m(m_rows, target_rows):
    """Tile of the flattened Hp*Wp row axis: multiple of 8 (sublane), close to
    `target_rows`, and >= 2 blocks whenever there is enough work so the
    BlockSpec pipeline double-buffers and v7x's 2 TensorCores both get steps."""
    if m_rows < 128:
        return _round_up(m_rows, 8)        # tiny problem: one full-extent block
    n_blk = max(2, _cdiv(m_rows, target_rows))
    return _round_up(_cdiv(m_rows, n_blk), 8)


def _tiling_plan(m_rows, kf, d, in_esz, out_esz):
    cap = _vmem_capacity_bytes()
    small_vmem = cap <= 80 * 1024 * 1024            # v7x (64 MiB) vs v5e/v6e (128 MiB)
    target_rows = 256 if small_vmem else 512
    vmem_limit = (40 if small_vmem else 96) * 1024 * 1024

    tile_m = _pick_tile_m(m_rows, target_rows)

    def need(t):
        return (2 * t * kf * in_esz                 # A tile, double-buffered
                + 2 * t * d * out_esz               # out tile, double-buffered
                + 2 * kf * d * in_esz               # Wf (conservatively x2)
                + 8 * d * 4 + (1 << 20))            # biases / LN params + slack

    while need(tile_m) > vmem_limit and tile_m > 8:
        tile_m = max(8, _round_up(tile_m // 2, 8))
    return tile_m, vmem_limit


# ----------------------------------------------------------------------------
# CnnEmbed forward
# ----------------------------------------------------------------------------
def cnn_embed_forward(x, params, patch_size, *,
                      compute_dtype=jnp.bfloat16, out_dtype=jnp.bfloat16):
    """x: (B, Cin, H, W) NCHW  ->  (B, (H//ps)*(W//ps), embed_dim)."""
    B, Cin, H, W = x.shape
    ps = int(patch_size)
    assert H % ps == 0 and W % ps == 0, "image dims must be multiples of patch"
    assert ps % 2 == 0 and H % 2 == 0 and W % 2 == 0
    k2 = ps // 2
    H1, W1 = H // 2, W // 2
    Hp, Wp = H1 // k2, W1 // k2
    M = Hp * Wp
    K1 = Cin * 25
    Kf = k2 * k2 * K1

    w1, b1 = params["w1"], params["b1"]          # (Cconv, Cin, 5, 5), (Cconv,)
    w2, b2 = params["w2"], params["b2"]          # (D, Cconv, k2, k2), (D,)
    gamma, beta = params["gamma"], params["beta"]
    D = w2.shape[0]

    # ---- fold conv1 into conv2 at trace time (fp32, tiny tensors) ----------
    #   y2 = sum_ij (A[i,j] @ W1 + b1) @ W2[:,:,i,j] + b2  =  A_flat @ Wf + bf
    hi = jax.lax.Precision.HIGHEST
    w1_mat = w1.reshape(w1.shape[0], K1).T.astype(jnp.float32)        # (K1, Cconv)
    w2_tap = jnp.transpose(w2, (2, 3, 1, 0)).astype(jnp.float32)      # (k2,k2,Cc,D)
    wf = jnp.einsum("kc,ijcd->ijkd", w1_mat, w2_tap, precision=hi)
    wf = wf.reshape(Kf, D).astype(compute_dtype)                      # (Kf, D)
    bf = (jnp.einsum("c,cd->d", b1.astype(jnp.float32),
                     w2_tap.sum(axis=(0, 1)), precision=hi)
          + b2.astype(jnp.float32)).reshape(1, D)
    g_r = gamma.reshape(1, D).astype(jnp.float32)
    be_r = beta.reshape(1, D).astype(jnp.float32)

    # ---- glue: conv1 im2col directly in the fused-GEMM layout --------------
    # A[b, hp*Wp+wp, ((i*k2+j)*Cin+c)*25 + kh*5 + kw]
    #     = xpad[b, c, 2*(hp*k2+i)+kh, 2*(wp*k2+j)+kw]
    xpad = jnp.pad(x, ((0, 0), (0, 0), (2, 2), (2, 2)))
    cols = [xpad[:, :, kh:kh + 2 * H1:2, kw:kw + 2 * W1:2]
            for kh in range(5) for kw in range(5)]
    t = jnp.stack(cols, axis=2)                        # (B, Cin, 25, H1, W1)
    t = t.reshape(B, Cin, 25, Hp, k2, Wp, k2)
    a = jnp.transpose(t, (0, 3, 5, 4, 6, 1, 2))        # (B, Hp, Wp, i, j, Cin, 25)
    a = a.reshape(B, M, Kf).astype(compute_dtype)

    # ---- tiling of the flattened patch-row axis -----------------------------
    in_esz = jnp.dtype(compute_dtype).itemsize
    out_esz = jnp.dtype(out_dtype).itemsize
    tile_m, vmem_limit = _tiling_plan(M, Kf, D, in_esz, out_esz)
    n_blk = _cdiv(M, tile_m)
    m_pad = n_blk * tile_m
    if m_pad != M:
        a = jnp.pad(a, ((0, 0), (0, m_pad - M), (0, 0)))

    cost = pl.CostEstimate(
        flops=2 * B * m_pad * Kf * D,
        transcendentals=B * m_pad * D,
        bytes_accessed=(B * m_pad * Kf + Kf * D) * in_esz
        + (bf.size + g_r.size + be_r.size) * 4
        + B * m_pad * D * out_esz,
    )

    out = pl.pallas_call(
        _fused_embed_kernel,
        out_shape=jax.ShapeDtypeStruct((B, m_pad, D), out_dtype),
        grid=(B, n_blk),
        in_specs=[
            # streamed A tile: pipelined / double-buffered across grid steps
            pl.BlockSpec((1, tile_m, Kf), lambda b, j: (b, j, 0)),
            # folded weight / bias / LN params: constant index_map -> resident
            pl.BlockSpec((Kf, D), lambda b, j: (0, 0)),
            pl.BlockSpec((1, D), lambda b, j: (0, 0)),
            pl.BlockSpec((1, D), lambda b, j: (0, 0)),
            pl.BlockSpec((1, D), lambda b, j: (0, 0)),
        ],
        out_specs=pl.BlockSpec((1, tile_m, D), lambda b, j: (b, j, 0)),
        compiler_params=pltpu.CompilerParams(
            # independent output tiles on both axes -> megacore sharding on v7x
            dimension_semantics=("parallel", "parallel"),
            vmem_limit_bytes=int(vmem_limit),
        ),
        cost_estimate=cost,
    )(a, wf, bf, g_r, be_r)

    if m_pad != M:
        out = out[:, :M, :]
    return out


# ----------------------------------------------------------------------------
# Pure-JAX reference (for correctness check)
# ----------------------------------------------------------------------------
def reference_forward(x, params, patch_size):
    w1, b1, w2, b2 = params["w1"], params["b1"], params["w2"], params["b2"]
    gamma, beta = params["gamma"], params["beta"]
    k2 = patch_size // 2
    dn = ("NCHW", "OIHW", "NCHW")
    hi = jax.lax.Precision.HIGHEST
    y = jax.lax.conv_general_dilated(x, w1, (2, 2), ((2, 2), (2, 2)),
                                     dimension_numbers=dn, precision=hi)
    y = y + b1[None, :, None, None]
    y = jax.lax.conv_general_dilated(y, w2, (k2, k2), "VALID",
                                     dimension_numbers=dn, precision=hi)
    y = y + b2[None, :, None, None]
    y = jnp.transpose(y, (0, 2, 3, 1))                     # (B, Hp, Wp, D)
    mean = y.mean(-1, keepdims=True)
    var = ((y - mean) ** 2).mean(-1, keepdims=True)
    yn = (y - mean) / jnp.sqrt(var + 1e-5) * gamma + beta
    g = yn * 0.5 * (1.0 + jax.lax.erf(yn * 0.7071067811865476))
    g = jnp.transpose(g, (0, 3, 1, 2))                     # (B, D, Hp, Wp)
    Bb, Dd = g.shape[0], g.shape[1]
    return jnp.transpose(g.reshape(Bb, Dd, -1), (0, 2, 1))


# ----------------------------------------------------------------------------
if __name__ == "__main__":
    # Small shapes consistent with the module: img_size=16, patch_size=4,
    # in_chans=4, conv_channels=8, embed_dim=32, batch=2.
    B, Cin, H, W = 2, 4, 16, 16
    patch_size = 4
    Cconv, D = 8, 32
    k2 = patch_size // 2

    key = jax.random.PRNGKey(0)
    k_x, k_w1, k_b1, k_w2, k_b2 = jax.random.split(key, 5)
    x = jax.random.normal(k_x, (B, Cin, H, W), dtype=jnp.float32)
    params = {
        "w1": 0.1 * jax.random.normal(k_w1, (Cconv, Cin, 5, 5), jnp.float32),
        "b1": 0.1 * jax.random.normal(k_b1, (Cconv,), jnp.float32),
        "w2": 0.1 * jax.random.normal(k_w2, (D, Cconv, k2, k2), jnp.float32),
        "b2": 0.1 * jax.random.normal(k_b2, (D,), jnp.float32),
        "gamma": jnp.ones((D,), jnp.float32),   # nn.LayerNorm default init
        "beta": jnp.zeros((D,), jnp.float32),
    }

    fwd = jax.jit(cnn_embed_forward,
                  static_argnames=("patch_size", "compute_dtype", "out_dtype"))
    ref = jax.block_until_ready(reference_forward(x, params, patch_size))

    # fp32 matmul path + fp32 output: tight check against the conv reference.
    out_f32 = jax.block_until_ready(
        fwd(x, params, patch_size=patch_size,
            compute_dtype=jnp.float32, out_dtype=jnp.float32))
    assert out_f32.shape == (B, (H // patch_size) * (W // patch_size), D), out_f32.shape
    err32 = float(jnp.max(jnp.abs(out_f32 - ref)))
    assert err32 < 5e-4, err32

    # bf16 MXU path (fp32 accumulation, fp32 epilogue, bf16 output): loose
    # check, since activations and the folded weight are quantized to bf16.
    out_bf16 = jax.block_until_ready(
        fwd(x, params, patch_size=patch_size,
            compute_dtype=jnp.bfloat16, out_dtype=jnp.bfloat16))
    errbf = float(jnp.max(jnp.abs(out_bf16.astype(jnp.float32) - ref)))
    assert errbf < 0.25, errbf

    print("KERNEL_OK")
</pallas_src>

<mosaic_0001>
module attributes {stable_mosaic.version = 11 : i64} {
  func.func @_fused_embed_kernel(%arg0: i32, %arg1: i32, %arg2: memref<1x16x400xf32, #tpu.memory_space<vmem>>, %arg3: memref<400x32xf32, #tpu.memory_space<vmem>>, %arg4: memref<1x32xf32, #tpu.memory_space<vmem>>, %arg5: memref<1x32xf32, #tpu.memory_space<vmem>>, %arg6: memref<1x32xf32, #tpu.memory_space<vmem>>, %arg7: memref<1x16x32xf32, #tpu.memory_space<vmem>>) attributes {dimension_semantics = [#tpu.dimension_semantics<parallel>, #tpu.dimension_semantics<parallel>], iteration_bounds = array<i64: 2, 1>, scalar_prefetch = 0 : i64, scratch_operands = 0 : i64, tpu.core_type = #tpu.core_type<tc>, window_params = [{transform_indices = @transform_0, window_bounds = array<i64: 1, 16, 400>}, {pipeline_mode = #tpu.pipeline_mode<synchronous>, transform_indices = @transform_1, window_bounds = array<i64: 400, 32>}, {pipeline_mode = #tpu.pipeline_mode<synchronous>, transform_indices = @transform_2, window_bounds = array<i64: 1, 32>}, {pipeline_mode = #tpu.pipeline_mode<synchronous>, transform_indices = @transform_3, window_bounds = array<i64: 1, 32>}, {pipeline_mode = #tpu.pipeline_mode<synchronous>, transform_indices = @transform_4, window_bounds = array<i64: 1, 32>}, {transform_indices = @transform_5, window_bounds = array<i64: 1, 16, 32>}]} {
    %c0 = arith.constant 0 : index
    %c0_0 = arith.constant 0 : index
    %c0_1 = arith.constant 0 : index
    %0 = vector.load %arg2[%c0, %c0_0, %c0_1] : memref<1x16x400xf32, #tpu.memory_space<vmem>>, vector<1x16x400xf32>
    %1 = vector.shape_cast %0 : vector<1x16x400xf32> to vector<16x400xf32>
    %c0_2 = arith.constant 0 : index
    %c0_3 = arith.constant 0 : index
    %2 = vector.load %arg3[%c0_2, %c0_3] : memref<400x32xf32, #tpu.memory_space<vmem>>, vector<400x32xf32>
    %cst = arith.constant dense<0.000000e+00> : vector<16x32xf32>
    %3 = tpu.matmul %1, %2, %cst {dimension_numbers = #tpu.dot_dimension_numbers<[1], [0], [0], [1], [0, 0, 1, 1], [], []>} : vector<16x400xf32>, vector<400x32xf32>, vector<16x32xf32> -> vector<16x32xf32>
    %c0_4 = arith.constant 0 : index
    %c0_5 = arith.constant 0 : index
    %4 = vector.load %arg4[%c0_4, %c0_5] : memref<1x32xf32, #tpu.memory_space<vmem>>, vector<1x32xf32>
    %5 = vector.broadcast %4 : vector<1x32xf32> to vector<16x32xf32>
    %6 = arith.addf %3, %5 : vector<16x32xf32>
    %cst_6 = arith.constant dense<0.000000e+00> : vector<16xf32>
    %7 = vector.multi_reduction <add>, %6, %cst_6 [1] : vector<16x32xf32> to vector<16xf32>
    %8 = vector.shape_cast %7 : vector<16xf32> to vector<16x1xf32>
    %cst_7 = arith.constant 3.200000e+01 : f32
    %9 = vector.broadcast %cst_7 : f32 to vector<16x1xf32>
    %10 = arith.divf %8, %9 : vector<16x1xf32>
    %11 = vector.broadcast %10 : vector<16x1xf32> to vector<16x32xf32>
    %12 = arith.subf %6, %11 : vector<16x32xf32>
    %13 = arith.mulf %12, %12 : vector<16x32xf32>
    %cst_8 = arith.constant dense<0.000000e+00> : vector<16xf32>
    %14 = vector.multi_reduction <add>, %13, %cst_8 [1] : vector<16x32xf32> to vector<16xf32>
    %15 = vector.shape_cast %14 : vector<16xf32> to vector<16x1xf32>
    %cst_9 = arith.constant 3.200000e+01 : f32
    %16 = vector.broadcast %cst_9 : f32 to vector<16x1xf32>
    %17 = arith.divf %15, %16 : vector<16x1xf32>
    %18 = vector.broadcast %10 : vector<16x1xf32> to vector<16x32xf32>
    %19 = arith.subf %6, %18 : vector<16x32xf32>
    %cst_10 = arith.constant 9.99999974E-6 : f32
    %20 = vector.broadcast %cst_10 : f32 to vector<16x1xf32>
    %21 = arith.addf %17, %20 : vector<16x1xf32>
    %22 = math.rsqrt %21 : vector<16x1xf32>
    %23 = vector.broadcast %22 : vector<16x1xf32> to vector<16x32xf32>
    %24 = arith.mulf %19, %23 : vector<16x32xf32>
    %c0_11 = arith.constant 0 : index
    %c0_12 = arith.constant 0 : index
    %25 = vector.load %arg5[%c0_11, %c0_12] : memref<1x32xf32, #tpu.memory_space<vmem>>, vector<1x32xf32>
    %26 = vector.broadcast %25 : vector<1x32xf32> to vector<16x32xf32>
    %27 = arith.mulf %24, %26 : vector<16x32xf32>
    %c0_13 = arith.constant 0 : index
    %c0_14 = arith.constant 0 : index
    %28 = vector.load %arg6[%c0_13, %c0_14] : memref<1x32xf32, #tpu.memory_space<vmem>>, vector<1x32xf32>
    %29 = vector.broadcast %28 : vector<1x32xf32> to vector<16x32xf32>
    %30 = arith.addf %27, %29 : vector<16x32xf32>
    %cst_15 = arith.constant 5.000000e-01 : f32
    %31 = vector.broadcast %cst_15 : f32 to vector<16x32xf32>
    %32 = arith.mulf %30, %31 : vector<16x32xf32>
    %cst_16 = arith.constant 0.707106769 : f32
    %33 = vector.broadcast %cst_16 : f32 to vector<16x32xf32>
    %34 = arith.mulf %30, %33 : vector<16x32xf32>
    %35 = math.erf %34 : vector<16x32xf32>
    %cst_17 = arith.constant 1.000000e+00 : f32
    %36 = vector.broadcast %cst_17 : f32 to vector<16x32xf32>
    %37 = arith.addf %36, %35 : vector<16x32xf32>
    %38 = arith.mulf %32, %37 : vector<16x32xf32>
    %c0_18 = arith.constant 0 : index
    %c0_19 = arith.constant 0 : index
    %c0_20 = arith.constant 0 : index
    %39 = vector.load %arg7[%c0_18, %c0_19, %c0_20] : memref<1x16x32xf32, #tpu.memory_space<vmem>>, vector<1x16x32xf32>
    %40 = vector.shape_cast %39 : vector<1x16x32xf32> to vector<16x32xf32>
    %41 = vector.shape_cast %38 : vector<16x32xf32> to vector<1x16x32xf32>
    tpu.vector_store %arg7[%c0_18, %c0_19, %c0_20], %41 {strides = array<i32>} : memref<1x16x32xf32, #tpu.memory_space<vmem>>, vector<1x16x32xf32>,
    return
  }
  func.func @transform_0(%arg0: i32, %arg1: i32) -> (i32, i32, i32) {
    %c0_i32 = arith.constant 0 : i32
    %c0_i32_0 = arith.constant 0 : i32
    return %arg0, %arg1, %c0_i32 : i32, i32, i32
  }
  func.func @transform_1(%arg0: i32, %arg1: i32) -> (i32, i32) {
    %c0_i32 = arith.constant 0 : i32
    %c0_i32_0 = arith.constant 0 : i32
    %c0_i32_1 = arith.constant 0 : i32
    return %c0_i32, %c0_i32_0 : i32, i32
  }
  func.func @transform_2(%arg0: i32, %arg1: i32) -> (i32, i32) {
    %c0_i32 = arith.constant 0 : i32
    %c0_i32_0 = arith.constant 0 : i32
    %c0_i32_1 = arith.constant 0 : i32
    return %c0_i32, %c0_i32_0 : i32, i32
  }
  func.func @transform_3(%arg0: i32, %arg1: i32) -> (i32, i32) {
    %c0_i32 = arith.constant 0 : i32
    %c0_i32_0 = arith.constant 0 : i32
    %c0_i32_1 = arith.constant 0 : i32
    return %c0_i32, %c0_i32_0 : i32, i32
  }
  func.func @transform_4(%arg0: i32, %arg1: i32) -> (i32, i32) {
    %c0_i32 = arith.constant 0 : i32
    %c0_i32_0 = arith.constant 0 : i32
    %c0_i32_1 = arith.constant 0 : i32
    return %c0_i32, %c0_i32_0 : i32, i32
  }
  func.func @transform_5(%arg0: i32, %arg1: i32) -> (i32, i32, i32) {
    %c0_i32 = arith.constant 0 : i32
    %c0_i32_0 = arith.constant 0 : i32
    return %arg0, %arg1, %c0_i32 : i32, i32, i32
  }
}

</mosaic_0001>

<llo_original>
// kernel: cnn_embed_forward.1
$region0: #{cnn_embed_forward.1}
  #allocation0 [shape = 'u32[]', space=smem, size = 0x4, offset = 0x4, fixed_abs, tag = 'smem constant byte address 0x4 - core index']
  #allocation1 [shape = 'u32[144,128]{1,0:T(1,128)}', space=vmem, size = 0x12000, scoped, tag = 'internal scratch']
  %s0 = inlined_call_operand.hbm [shape: f32[2,16,400], index: 0, kind: input, shape index: {}]
  %s1 = inlined_call_operand.hbm [shape: f32[400,32], index: 1, kind: input, shape index: {}]
  %s2 = inlined_call_operand.hbm [shape: f32[1,32], index: 2, kind: input, shape index: {}]
  %s3 = inlined_call_operand.hbm [shape: f32[1,32], index: 3, kind: input, shape index: {}]
  %s4 = inlined_call_operand.hbm [shape: f32[1,32], index: 4, kind: input, shape index: {}]
  %s5 = inlined_call_operand.hbm [shape: f32[2,16,32], index: 5, kind: output, shape index: {}]
  %s6 = sld [smem:[#allocation0]]
  $region73: #{cnn_embed_forward.1} parent=0
    _
  %s8 = ssub.s32 1, %s6
  %s9 = scalar_select 0, %s8, %s6
  $region1: #{cnn_embed_forward.1} parent=0
    #allocation2 [shape = 'u8[65536]{0}', space=vmem, size = 0x10000, scoped, tag = 'input window, operand 0']
    #allocation3 [shape = 's32[2]{0}', space=sflag, size = 0x8, scoped, tag = 'scoped memory for cnn_embed_forward.1']
    #allocation4 [shape = 's32[2]{0}', space=sflag, size = 0x8, scoped, tag = 'scoped memory for cnn_embed_forward.1']
    #allocation5 [shape = 'u8[204800]{0}', space=vmem, size = 0x32000, scoped, tag = 'input window, operand 1, single buffered']
    #allocation6 [shape = 's32[1]{0}', space=sflag, size = 0x4, scoped, tag = 'scoped memory for cnn_embed_forward.1']
    #allocation7 [shape = 'u8[512]{0}', space=vmem, size = 0x400, scoped, tag = 'input window, operand 2, single buffered']
    #allocation8 [shape = 'u8[512]{0}', space=vmem, size = 0x400, scoped, tag = 'input window, operand 3, single buffered']
    #allocation9 [shape = 's32[1]{0}', space=sflag, size = 0x4, scoped, tag = 'scoped memory for cnn_embed_forward.1']
    #allocation10 [shape = 'u8[512]{0}', space=vmem, size = 0x400, scoped, tag = 'input window, operand 4, single buffered']
    #allocation11 [shape = 'u8[16384]{0}', space=vmem, size = 0x4000, scoped, tag = 'output window, operand 0']
    %10 = vsyncpa [#allocation3], 0
    %s11 = scalar_lea.sflag [#allocation3], 1
    %12 = vsyncpa %s11, 0
    %13 = vsyncpa [#allocation6], 0
    %14 = vsyncpa [#allocation9], 0
    %15 = vsyncpa [#allocation4], 0
    %s16 = scalar_lea.sflag [#allocation4], 1
    %17 = vsyncpa %s16, 0
    loop: start=0, step=1, limit=4
    $region2: #{cnn_embed_forward.1} parent=1 // loop_pre_header
      _
    $region3: #{cnn_embed_forward.1} parent=1 // loop_header
      %s19 = sphi 0, %s23
      %p20 = scmp.ge.s32.totalorder %s19, 4
      %s26 = sphi 0, %s38
      %s27 = sphi 0, %s34
      %s28 = sphi 0, %s26
      %s29 = sphi 0, %s27
      %s30 = sphi 0, %s28
      %s31 = sphi 0, %s29
      %s43 = sphi 0, %s45
      %s46 = sphi 0, %s43
      %s47 = sphi 0, %s46
      %s63 = sphi 0, %s47
      %s67 = sphi 0, %s67
      %s69 = sphi 0, %s67
      %s70 = sphi 0, %s69
      %s84 = sphi 0, %s70
      %s88 = sphi 0, %s88
      %s90 = sphi 0, %s88
      %s91 = sphi 0, %s90
      %s105 = sphi 0, %s91
      %s109 = sphi 0, %s109
      %s111 = sphi 0, %s109
      %s112 = sphi 0, %s111
      %s126 = sphi 0, %s112
      %s130 = sphi 0, %s130
      %s132 = sphi 0, %s130
      %s133 = sphi 0, %s132
      %s147 = sphi 0, %s133
      %s155 = sphi 0, %s157
      %s158 = sphi 0, %s155
      %s159 = sphi 0, %s158
      %s175 = sphi 0, %s159
    $region4: #{cnn_embed_forward.1} parent=1 // loop_header_branch
      %22 = sbr.rel (%p20) target = $region8
    $region5: #{cnn_embed_forward.1} parent=1 // loop_body
      %s24 = ssub.s32 %s19, 1
      %s25 = ssub.s32 %s19, 2
      %s32 = sadd.s32 1, %s27
      %p33 = scmp.ge.s32.totalorder %s32, 1
      %s34 = scalar_select %p33, 0, %s32
      %s35 = sadd.s32 1, %s26
      %s36 = scalar_select %p33, %s35, %s26
      %p37 = scmp.ge.s32.totalorder %s36, 2
      %s38 = scalar_select %p37, 0, %s36
      %s39 = ssub.s32 %s26, %s38
      %s40 = ssub.s32 %s27, %s34
      %s41 = sor.u32 %s39, %s40
      %p42 = scmp.eq.s32.totalorder %s41, 0
      %s44 = sadd.s32 %s43, 1
      %s45 = scalar_select %p42, %s43, %s44
      %p48 = pneg %p42
      %p49 = scmp.eq.s32.totalorder %s19, 1
      %p50 = por %p48, %p49
      %p51 = scmp.ne.s32.totalorder %s43, %s46
      %p52 = scmp.eq.s32.totalorder %s19, 0
      %p53 = por %p51, %p52
      %p54 = scmp.ne.s32.totalorder %s43, %s46
      %p55 = scmp.eq.s32.totalorder %s24, 1
      %p56 = por %p54, %p55
      %p57 = scmp.ne.s32.totalorder %s46, %s47
      %p58 = scmp.eq.s32.totalorder %s24, 0
      %p59 = por %p57, %p58
      %p60 = scmp.ne.s32.totalorder %s46, %s47
      %p61 = scmp.eq.s32.totalorder %s25, 1
      %p62 = por %p60, %p61
      %p64 = scmp.ne.s32.totalorder %s47, %s63
      %p65 = scmp.eq.s32.totalorder %s25, 0
      %p66 = por %p64, %p65
      %s68 = sadd.s32 %s67, 1
      %p71 = scmp.eq.s32.totalorder %s19, 1
      %p72 = scmp.ne.s32.totalorder %s67, %s69
      %p73 = scmp.eq.s32.totalorder %s19, 0
      %p74 = por %p72, %p73
      %p75 = scmp.ne.s32.totalorder %s67, %s69
      %p76 = scmp.eq.s32.totalorder %s24, 1
      %p77 = por %p75, %p76
      %p78 = scmp.ne.s32.totalorder %s69, %s70
      %p79 = scmp.eq.s32.totalorder %s24, 0
      %p80 = por %p78, %p79
      %p81 = scmp.ne.s32.totalorder %s69, %s70
      %p82 = scmp.eq.s32.totalorder %s25, 1
      %p83 = por %p81, %p82
      %p85 = scmp.ne.s32.totalorder %s70, %s84
      %p86 = scmp.eq.s32.totalorder %s25, 0
      %p87 = por %p85, %p86
      %s89 = sadd.s32 %s88, 1
      %p92 = scmp.eq.s32.totalorder %s19, 1
      %p93 = scmp.ne.s32.totalorder %s88, %s90
      %p94 = scmp.eq.s32.totalorder %s19, 0
      %p95 = por %p93, %p94
      %p96 = scmp.ne.s32.totalorder %s88, %s90
      %p97 = scmp.eq.s32.totalorder %s24, 1
      %p98 = por %p96, %p97
      %p99 = scmp.ne.s32.totalorder %s90, %s91
      %p100 = scmp.eq.s32.totalorder %s24, 0
      %p101 = por %p99, %p100
      %p102 = scmp.ne.s32.totalorder %s90, %s91
      %p103 = scmp.eq.s32.totalorder %s25, 1
      %p104 = por %p102, %p103
      %p106 = scmp.ne.s32.totalorder %s91, %s105
      %p107 = scmp.eq.s32.totalorder %s25, 0
      %p108 = por %p106, %p107
      %s110 = sadd.s32 %s109, 1
      %p113 = scmp.eq.s32.totalorder %s19, 1
      %p114 = scmp.ne.s32.totalorder %s109, %s111
      %p115 = scmp.eq.s32.totalorder %s19, 0
      %p116 = por %p114, %p115
      %p117 = scmp.ne.s32.totalorder %s109, %s111
      %p118 = scmp.eq.s32.totalorder %s24, 1
      %p119 = por %p117, %p118
      %p120 = scmp.ne.s32.totalorder %s111, %s112
      %p121 = scmp.eq.s32.totalorder %s24, 0
      %p122 = por %p120, %p121
      %p123 = scmp.ne.s32.totalorder %s111, %s112
      %p124 = scmp.eq.s32.totalorder %s25, 1
      %p125 = por %p123, %p124
      %p127 = scmp.ne.s32.totalorder %s112, %s126
      %p128 = scmp.eq.s32.totalorder %s25, 0
      %p129 = por %p127, %p128
      %s131 = sadd.s32 %s130, 1
      %p134 = scmp.eq.s32.totalorder %s19, 1
      %p135 = scmp.ne.s32.totalorder %s130, %s132
      %p136 = scmp.eq.s32.totalorder %s19, 0
      %p137 = por %p135, %p136
      %p138 = scmp.ne.s32.totalorder %s130, %s132
      %p139 = scmp.eq.s32.totalorder %s24, 1
      %p140 = por %p138, %p139
      %p141 = scmp.ne.s32.totalorder %s132, %s133
      %p142 = scmp.eq.s32.totalorder %s24, 0
      %p143 = por %p141, %p142
      %p144 = scmp.ne.s32.totalorder %s132, %s133
      %p145 = scmp.eq.s32.totalorder %s25, 1
      %p146 = por %p144, %p145
      %p148 = scmp.ne.s32.totalorder %s133, %s147
      %p149 = scmp.eq.s32.totalorder %s25, 0
      %p150 = por %p148, %p149
      %s151 = ssub.s32 %s26, %s38
      %s152 = ssub.s32 %s27, %s34
      %s153 = sor.u32 %s151, %s152
      %p154 = scmp.eq.s32.totalorder %s153, 0
      %s156 = sadd.s32 %s155, 1
      %s157 = scalar_select %p154, %s155, %s156
      %p160 = pneg %p154
      %p161 = scmp.eq.s32.totalorder %s19, 1
      %p162 = por %p160, %p161
      %p163 = scmp.ne.s32.totalorder %s155, %s158
      %p164 = scmp.eq.s32.totalorder %s19, 0
      %p165 = por %p163, %p164
      %p166 = scmp.ne.s32.totalorder %s155, %s158
      %p167 = scmp.eq.s32.totalorder %s24, 1
      %p168 = por %p166, %p167
      %p169 = scmp.ne.s32.totalorder %s158, %s159
      %p170 = scmp.eq.s32.totalorder %s24, 0
      %p171 = por %p169, %p170
      %p172 = scmp.ne.s32.totalorder %s158, %s159
      %p173 = scmp.eq.s32.totalorder %s25, 1
      %p174 = por %p172, %p173
      %p176 = scmp.ne.s32.totalorder %s159, %s175
      %p177 = scmp.eq.s32.totalorder %s25, 0
      %p178 = por %p176, %p177
      %p179 = scmp.le.s32.totalorder 1, %s19
      %p180 = scmp.lt.s32.totalorder %s19, 3
      %p181 = pnand %p179, %p180
      %p182 = pneg %p181
      // Predicated region
      $region9: #{cnn_embed_forward.1} parent=5 // pred_check
        _
      $region10: #{cnn_embed_forward.1} parent=5 // pred_check_branch
        %184 = sbr.rel (%p181) target = $region12
      $region11: #{cnn_embed_forward.1} parent=5 // pred_region
        %s185 = ssub.s32 %s19, 1
        // Predicated region
        $region13: #{cnn_embed_forward.1} parent=11 // pred_check
          %p186 = pneg %p80
        $region14: #{cnn_embed_forward.1} parent=11 // pred_check_branch
          %188 = sbr.rel (%p186) target = $region16
        $region15: #{cnn_embed_forward.1} parent=11 // pred_region
          %s190 = ssub.s32 6400, 6400
          %191 = vsyncadd [#allocation6], %s190
          %s192 = sshll.u32 [#allocation5], 4
          %s193 = int_to_ptr.vmem [resolvable:$true] %s192
          %198 = dma.hbm_to_vmem [thread:$0]  %s1, 6400, %s193, [#allocation6], 128, 128, 8
        $region16: #{cnn_embed_forward.1} parent=11 // pred_fallthru
          _
        // Predicated region
        $region17: #{cnn_embed_forward.1} parent=11 // pred_check
          %p199 = pneg %p101
        $region18: #{cnn_embed_forward.1} parent=11 // pred_check_branch
          %201 = sbr.rel (%p199) target = $region20
        $region19: #{cnn_embed_forward.1} parent=11 // pred_region
          %s203 = ssub.s32 16, 16
          %204 = vsyncadd [#allocation6], %s203
          %s206 = sshll.u32 [#allocation7], 4
          %s207 = int_to_ptr.vmem [resolvable:$true] %s206
          %209 = dma.hbm_to_vmem [thread:$0]  %s2, 16, %s207, [#allocation6]
        $region20: #{cnn_embed_forward.1} parent=11 // pred_fallthru
          _
        // Predicated region
        $region21: #{cnn_embed_forward.1} parent=11 // pred_check
          %p210 = pneg %p122
        $region22: #{cnn_embed_forward.1} parent=11 // pred_check_branch
          %212 = sbr.rel (%p210) target = $region24
        $region23: #{cnn_embed_forward.1} parent=11 // pred_region
          %s214 = ssub.s32 16, 16
          %215 = vsyncadd [#allocation9], %s214
          %s217 = sshll.u32 [#allocation8], 4
          %s218 = int_to_ptr.vmem [resolvable:$true] %s217
          %220 = dma.hbm_to_vmem [thread:$0]  %s3, 16, %s218, [#allocation9]
        $region24: #{cnn_embed_forward.1} parent=11 // pred_fallthru
          _
        // Predicated region
        $region25: #{cnn_embed_forward.1} parent=11 // pred_check
          %p221 = pneg %p143
        $region26: #{cnn_embed_forward.1} parent=11 // pred_check_branch
          %223 = sbr.rel (%p221) target = $region28
        $region27: #{cnn_embed_forward.1} parent=11 // pred_region
          %s225 = ssub.s32 16, 16
          %226 = vsyncadd [#allocation9], %s225
          %s228 = sshll.u32 [#allocation10], 4
          %s229 = int_to_ptr.vmem [resolvable:$true] %s228
          %231 = dma.hbm_to_vmem [thread:$0]  %s4, 16, %s229, [#allocation9]
        $region28: #{cnn_embed_forward.1} parent=11 // pred_fallthru
          _
      $region12: #{cnn_embed_forward.1} parent=5 // pred_fallthru
        _
      %p232 = scmp.lt.s32.totalorder %s19, 2
      // Predicated region
      $region29: #{cnn_embed_forward.1} parent=5 // pred_check
        %p233 = pneg %p232
      $region30: #{cnn_embed_forward.1} parent=5 // pred_check_branch
        %235 = sbr.rel (%p233) target = $region32
      $region31: #{cnn_embed_forward.1} parent=5 // pred_region
        // Predicated region
        $region33: #{cnn_embed_forward.1} parent=31 // pred_check
          %p236 = pneg %p53
        $region34: #{cnn_embed_forward.1} parent=31 // pred_check_branch
          %238 = sbr.rel (%p236) target = $region36
        $region35: #{cnn_embed_forward.1} parent=31 // pred_region
          %s239 = sand.u32 %s43, 1
          %s240 = scalar_lea.sflag [#allocation3], %s239
          %s241 = sand.u32 %s43, 1
          %s242 = smul.addr %s241, 64
          %s243 = scalar_lea.vmem [#allocation2], %s242
          %s244 = smul.u32 2, %s27
          %s246 = ssub.s32 1024, 1024
          %247 = vsyncadd %s240, %s246
          %s248 = smul.addr %s244, 4
          %s249 = smul.addr %s26, 8
          %s250 = sadd.s32 %s248, %s249
          %s251 = smul.addr %s250, 128
          %s252 = scalar_lea.hbm %s0, %s251
          %s253 = sshll.u32 %s243, 4
          %s254 = int_to_ptr.vmem [resolvable:$true] %s253
          %259 = dma.hbm_to_vmem [thread:$0]  %s252, 1024, %s254, %s240, 512, 512, 32
        $region36: #{cnn_embed_forward.1} parent=31 // pred_fallthru
          _
      $region32: #{cnn_embed_forward.1} parent=5 // pred_fallthru
        _
      %p260 = scmp.le.s32.totalorder 1, %s19
      %p261 = scmp.lt.s32.totalorder %s19, 3
      %p262 = pnand %p260, %p261
      %p263 = pneg %p262
      // Predicated region
      $region37: #{cnn_embed_forward.1} parent=5 // pred_check
        _
      $region38: #{cnn_embed_forward.1} parent=5 // pred_check_branch
        %265 = sbr.rel (%p262) target = $region40
      $region39: #{cnn_embed_forward.1} parent=5 // pred_region
        %s266 = ssub.s32 %s19, 1
        %s267 = sand.u32 %s46, 1
        %s268 = scalar_lea.sflag [#allocation3], %s267
        %s269 = sand.u32 %s46, 1
        %s270 = smul.addr %s269, 64
        %s271 = scalar_lea.vmem [#allocation2], %s270
        // Predicated region
        $region41: #{cnn_embed_forward.1} parent=39 // pred_check
          %p272 = pneg %p59
        $region42: #{cnn_embed_forward.1} parent=39 // pred_check_branch
          %274 = sbr.rel (%p272) target = $region44
        $region43: #{cnn_embed_forward.1} parent=39 // pred_region
          %275 = dma.done %s268, 1024
        $region44: #{cnn_embed_forward.1} parent=39 // pred_fallthru
          _
        // Predicated region
        $region45: #{cnn_embed_forward.1} parent=39 // pred_check
          %p276 = pneg %p80
        $region46: #{cnn_embed_forward.1} parent=39 // pred_check_branch
          %278 = sbr.rel (%p276) target = $region48
        $region47: #{cnn_embed_forward.1} parent=39 // pred_region
          %279 = dma.done [#allocation6], 6400
        $region48: #{cnn_embed_forward.1} parent=39 // pred_fallthru
          _
        // Predicated region
        $region49: #{cnn_embed_forward.1} parent=39 // pred_check
          %p280 = pneg %p101
        $region50: #{cnn_embed_forward.1} parent=39 // pred_check_branch
          %282 = sbr.rel (%p280) target = $region52
        $region51: #{cnn_embed_forward.1} parent=39 // pred_region
          %283 = dma.done [#allocation6], 16
        $region52: #{cnn_embed_forward.1} parent=39 // pred_fallthru
          _
        // Predicated region
        $region53: #{cnn_embed_forward.1} parent=39 // pred_check
          %p284 = pneg %p122
        $region54: #{cnn_embed_forward.1} parent=39 // pred_check_branch
          %286 = sbr.rel (%p284) target = $region56
        $region55: #{cnn_embed_forward.1} parent=39 // pred_region
          %287 = dma.done [#allocation9], 16
        $region56: #{cnn_embed_forward.1} parent=39 // pred_fallthru
          _
        // Predicated region
        $region57: #{cnn_embed_forward.1} parent=39 // pred_check
          %p288 = pneg %p143
        $region58: #{cnn_embed_forward.1} parent=39 // pred_check_branch
          %290 = sbr.rel (%p288) target = $region60
        $region59: #{cnn_embed_forward.1} parent=39 // pred_region
          %291 = dma.done [#allocation9], 16
        $region60: #{cnn_embed_forward.1} parent=39 // pred_fallthru
          _
        %s292 = sand.u32 %s46, 1
        %s293 = scalar_lea.sflag [#allocation3], %s292
        %s294 = sand.u32 %s46, 1
        %s295 = smul.addr %s294, 64
        %s296 = scalar_lea.vmem [#allocation2], %s295
        %p297 = pneg %p59
        %p298 = pneg %p56
        %p299 = pneg %p80
        %p300 = pneg %p77
        %p301 = pneg %p101
        %p302 = pneg %p98
        %p303 = pneg %p122
        %p304 = pneg %p119
        %p305 = pneg %p143
        %p306 = pneg %p140
        %p307 = pneg %p171
        %p308 = pneg %p168
        %s309 = sand.u32 %s158, 1
        %s310 = scalar_lea.sflag [#allocation4], %s309
        %s311 = sand.u32 %s158, 1
        %s312 = smul.addr %s311, 16
        %s313 = scalar_lea.vmem [#allocation11], %s312
        %s314 = smul.u32 2, %s29
        %s315 = smul.u32 2, %s29
        %v316 = vld [vmem:[%s271] sm:$0xff]
        %v317 = vld [vmem:[%s271 + $0x8] sm:$0xff]
        %v318 = vld [vmem:[%s271 + $0x10] sm:$0xff]
        %v319 = vld [vmem:[%s271 + $0x18] sm:$0xff]
        %v320 = vld [vmem:[%s271 + $0x20] sm:$0xff]
        %v321 = vld [vmem:[%s271 + $0x28] sm:$0xff]
        %v322 = vld [vmem:[%s271 + $0x30] sm:$0xff]
        %v323 = vld [vmem:[%s271 + $0x38] sm:$0xff]
        %v324 = vld [vmem:[#allocation5] sm:$0xff]
        %v325 = vld [vmem:[#allocation5 + $0x8] sm:$0xff]
        %v326 = vld [vmem:[#allocation5 + $0x10] sm:$0xff]
        %v327 = vld [vmem:[#allocation5 + $0x18] sm:$0xff]
        %v328 = vld [vmem:[#allocation5 + $0x20] sm:$0xff]
        %v329 = vld [vmem:[#allocation5 + $0x28] sm:$0xff]
        %v330 = vld [vmem:[#allocation5 + $0x30] sm:$0xff]
        %v331 = vld [vmem:[#allocation5 + $0x38] sm:$0xff]
        %v332 = vld [vmem:[#allocation5 + $0x40] sm:$0xff]
        %v333 = vld [vmem:[#allocation5 + $0x48] sm:$0xff]
        %v334 = vld [vmem:[#allocation5 + $0x50] sm:$0xff]
        %v335 = vld [vmem:[#allocation5 + $0x58] sm:$0xff]
        %v336 = vld [vmem:[#allocation5 + $0x60] sm:$0xff]
        %v337 = vld [vmem:[#allocation5 + $0x68] sm:$0xff]
        %v338 = vld [vmem:[#allocation5 + $0x70] sm:$0xff]
        %v339 = vld [vmem:[#allocation5 + $0x78] sm:$0xff]
        %v340 = vld [vmem:[#allocation5 + $0x80] sm:$0xff]
        %v341 = vld [vmem:[#allocation5 + $0x88] sm:$0xff]
        %v342 = vld [vmem:[#allocation5 + $0x90] sm:$0xff]
        %v343 = vld [vmem:[#allocation5 + $0x98] sm:$0xff]
        %v344 = vld [vmem:[#allocation5 + $0xa0] sm:$0xff]
        %v345 = vld [vmem:[#allocation5 + $0xa8] sm:$0xff]
        %v346 = vld [vmem:[#allocation5 + $0xb0] sm:$0xff]
        %v347 = vld [vmem:[#allocation5 + $0xb8] sm:$0xff]
        %v348 = vld [vmem:[#allocation5 + $0xc0] sm:$0xff]
        %v349 = vld [vmem:[#allocation5 + $0xc8] sm:$0xff]
        %v350 = vld [vmem:[#allocation5 + $0xd0] sm:$0xff]
        %v351 = vld [vmem:[#allocation5 + $0xd8] sm:$0xff]
        %v352 = vld [vmem:[#allocation5 + $0xe0] sm:$0xff]
        %v353 = vld [vmem:[#allocation5 + $0xe8] sm:$0xff]
        %v354 = vld [vmem:[#allocation5 + $0xf0] sm:$0xff]
        %v355 = vld [vmem:[#allocation5 + $0xf8] sm:$0xff]
        %v356 = vld [vmem:[#allocation5 + $0x100] sm:$0xff]
        %v357 = vld [vmem:[#allocation5 + $0x108] sm:$0xff]
        %v358 = vld [vmem:[#allocation5 + $0x110] sm:$0xff]
        %v359 = vld [vmem:[#allocation5 + $0x118] sm:$0xff]
        %v360 = vld [vmem:[#allocation5 + $0x120] sm:$0xff]
        %v361 = vld [vmem:[#allocation5 + $0x128] sm:$0xff]
        %v362 = vld [vmem:[#allocation5 + $0x130] sm:$0xff]
        %v363 = vld [vmem:[#allocation5 + $0x138] sm:$0xff]
        %v364 = vld [vmem:[#allocation5 + $0x140] sm:$0xff]
        %v365 = vld [vmem:[#allocation5 + $0x148] sm:$0xff]
        %v366 = vld [vmem:[#allocation5 + $0x150] sm:$0xff]
        %v367 = vld [vmem:[#allocation5 + $0x158] sm:$0xff]
        %v368 = vld [vmem:[#allocation5 + $0x160] sm:$0xff]
        %v369 = vld [vmem:[#allocation5 + $0x168] sm:$0xff]
        %v370 = vld [vmem:[#allocation5 + $0x170] sm:$0xff]
        %v371 = vld [vmem:[#allocation5 + $0x178] sm:$0xff]
        %v372 = vld [vmem:[#allocation5 + $0x180] sm:$0xff]
        %v373 = vld [vmem:[#allocation5 + $0x188] sm:$0xff]
        %v374 = vld [vmem:[#allocation7] sm:$0x1]
        %v376 = vlaneseq
        %v377 = vshrl.u32 %v376, 7
        %v378 = vsub.s32 0, %v377
        %v379 = vrot.slane %v374, %v378
        %vm381 = vcmask 130048
        %v383 = vsel %vm381, %v319, 0
        %v386 = vsel %vm381, %v323, 0
        %388 = vmatprep.subr.mxu0 0.0
        %389 = vmatpush1.msra.mxu0 %v324
        %390 = vmatprep.subr.mxu0 0.0
        %391 = vmatpush1.msra.mxu0 %v325
        %392 = vmatprep.subr.mxu0 0.0
        %393 = vmatpush1.msra.mxu0 %v326
        %394 = vmatprep.subr.mxu0 0.0
        %395 = vmatpush1.msra.mxu0 %v327
        %396 = vmatprep.subr.mxu0 0.0
        %397 = vmatpush1.msra.mxu0 %v328
        %398 = vmatprep.subr.mxu0 0.0
        %399 = vmatpush1.msra.mxu0 %v329
        %400 = vmatprep.subr.mxu0 0.0
        %401 = vmatpush1.msra.mxu0 %v330
        %402 = vmatprep.subr.mxu0 0.0
        %403 = vmatpush1.msra.mxu0 %v331
        %404 = vmatprep.subr.mxu0 0.0
        %405 = vmatpush1.msra.mxu0 %v332
        %406 = vmatprep.subr.mxu0 0.0
        %407 = vmatpush1.msra.mxu0 %v333
        %408 = vmatprep.subr.mxu0 0.0
        %409 = vmatpush1.msra.mxu0 %v334
        %410 = vmatprep.subr.mxu0 0.0
        %411 = vmatpush1.msra.mxu0 %v335
        %412 = vmatprep.subr.mxu0 0.0
        %413 = vmatpush1.msra.mxu0 %v336
        %414 = vmatprep.subr.mxu0 0.0
        %415 = vmatpush1.msra.mxu0 %v337
        %416 = vmatprep.subr.mxu0 0.0
        %417 = vmatpush1.msra.mxu0 %v338
        %418 = vmatprep.subr.mxu0 0.0
        %419 = vmatpush1.msra.mxu0 %v339
        %420 = vmatprep.subr.mxu0 0.0
        %421 = vmatpush1.msra.mxu0 %v340
        %422 = vmatprep.subr.mxu0 0.0
        %423 = vmatpush1.msra.mxu0 %v341
        %424 = vmatprep.subr.mxu0 0.0
        %425 = vmatpush1.msra.mxu0 %v342
        %426 = vmatprep.subr.mxu0 0.0
        %427 = vmatpush1.msra.mxu0 %v343
        %428 = vmatprep.subr.mxu0 0.0
        %429 = vmatpush1.msra.mxu0 %v344
        %430 = vmatprep.subr.mxu0 0.0
        %431 = vmatpush1.msra.mxu0 %v345
        %432 = vmatprep.subr.mxu0 0.0
        %433 = vmatpush1.msra.mxu0 %v346
        %434 = vmatprep.subr.mxu0 0.0
        %435 = vmatpush1.msra.mxu0 %v347
        %436 = vmatprep.subr.mxu0 0.0
        %437 = vmatpush1.msra.mxu0 %v348
        %438 = vmatprep.subr.mxu0 0.0
        %439 = vmatpush1.msra.mxu0 %v349
        %440 = vmatprep.subr.mxu0 0.0
        %441 = vmatpush1.msra.mxu0 %v350
        %442 = vmatprep.subr.mxu0 0.0
        %443 = vmatpush1.msra.mxu0 %v351
        %444 = vmatprep.subr.mxu0 0.0
        %445 = vmatpush1.msra.mxu0 %v352
        %446 = vmatprep.subr.mxu0 0.0
        %447 = vmatpush1.msra.mxu0 %v353
        %448 = vmatprep.subr.mxu0 0.0
        %449 = vmatpush1.msra.mxu0 %v354
        %450 = vmatprep.subr.mxu0 0.0
        %451 = vmatpush1.msra.mxu0 %v355
        %452 = vmatprep.mubr.f32.mxu0 %v317
        %453 = vmatmul.mubr.f32.gmra.mrb[0].mxu0 %v316
        %v454 = vpop.f32.mrb[0].mxu0
        %v455 = vadd.f32 %v379, %v454
        %v456 = vpop.f32.mrb[0].mxu0
        %457 = vmatprep.mubr.f32.mxu0 %v321
        %458 = vmatmul.mubr.f32.gmra.mrb[0].mxu0 %v320
        %v459 = vpop.f32.mrb[0].mxu0
        %v460 = vadd.f32 %v379, %v459
        %v461 = vpop.f32.mrb[0].mxu0
        %462 = vdwg.mxu0
        %463 = vmatprep.subr.mxu0 0.0
        %464 = vmatpush1.msra.mxu0 %v356
        %465 = vmatprep.subr.mxu0 0.0
        %466 = vmatpush1.msra.mxu0 %v357
        %467 = vmatprep.subr.mxu0 0.0
        %468 = vmatpush1.msra.mxu0 %v358
        %469 = vmatprep.subr.mxu0 0.0
        %470 = vmatpush1.msra.mxu0 %v359
        %471 = vmatprep.subr.mxu0 0.0
        %472 = vmatpush1.msra.mxu0 %v360
        %473 = vmatprep.subr.mxu0 0.0
        %474 = vmatpush1.msra.mxu0 %v361
        %475 = vmatprep.subr.mxu0 0.0
        %476 = vmatpush1.msra.mxu0 %v362
        %477 = vmatprep.subr.mxu0 0.0
        %478 = vmatpush1.msra.mxu0 %v363
        %479 = vmatprep.subr.mxu0 0.0
        %480 = vmatpush1.msra.mxu0 %v364
        %481 = vmatprep.subr.mxu0 0.0
        %482 = vmatpush1.msra.mxu0 %v365
        %483 = vmatprep.subr.mxu0 0.0
        %484 = vmatpush1.msra.mxu0 %v366
        %485 = vmatprep.subr.mxu0 0.0
        %486 = vmatpush1.msra.mxu0 %v367
        %487 = vmatprep.subr.mxu0 0.0
        %488 = vmatpush1.msra.mxu0 %v368
        %489 = vmatprep.subr.mxu0 0.0
        %490 = vmatpush1.msra.mxu0 %v369
        %491 = vmatprep.subr.mxu0 0.0
        %492 = vmatpush1.msra.mxu0 %v370
        %493 = vmatprep.subr.mxu0 0.0
        %494 = vmatpush1.msra.mxu0 %v371
        %495 = vmatprep.subr.mxu0 0.0
        %496 = vmatpush1.msra.mxu0 %v372
        %497 = vmatprep.subr.mxu0 0.0
        %498 = vmatpush1.msra.mxu0 %v373
        %499 = vmatprep.subr.mxu0 0.0
        %500 = vmatpush1.msra.mxu0 0.0
        %501 = vmatprep.subr.mxu0 0.0
        %502 = vmatpush1.msra.mxu0 0.0
        %503 = vmatprep.subr.mxu0 0.0
        %504 = vmatpush1.msra.mxu0 0.0
        %505 = vmatprep.subr.mxu0 0.0
        %506 = vmatpush1.msra.mxu0 0.0
        %507 = vmatprep.subr.mxu0 0.0
        %508 = vmatpush1.msra.mxu0 0.0
        %509 = vmatprep.subr.mxu0 0.0
        %510 = vmatpush1.msra.mxu0 0.0
        %511 = vmatprep.subr.mxu0 0.0
        %512 = vmatpush1.msra.mxu0 0.0
        %513 = vmatprep.subr.mxu0 0.0
        %514 = vmatpush1.msra.mxu0 0.0
        %515 = vmatprep.subr.mxu0 0.0
        %516 = vmatpush1.msra.mxu0 0.0
        %517 = vmatprep.subr.mxu0 0.0
        %518 = vmatpush1.msra.mxu0 0.0
        %519 = vmatprep.subr.mxu0 0.0
        %520 = vmatpush1.msra.mxu0 0.0
        %521 = vmatprep.subr.mxu0 0.0
        %522 = vmatpush1.msra.mxu0 0.0
        %523 = vmatprep.subr.mxu0 0.0
        %524 = vmatpush1.msra.mxu0 0.0
        %525 = vmatprep.subr.mxu0 0.0
        %526 = vmatpush1.msra.mxu0 0.0
        %527 = vmatprep.mubr.f32.mxu0 %v383
        %528 = vmatmul.mubr.f32.gmra.mrb[0].mxu0 %v318
        %v529 = vpop.f32.mrb[0].mxu0
        %v530 = vadd.f32 %v455, %v529
        %v531 = vpop.f32.mrb[0].mxu0
        %532 = vmatprep.mubr.f32.mxu0 %v386
        %533 = vmatmul.mubr.f32.gmra.mrb[0].mxu0 %v322
        %v534 = vpop.f32.mrb[0].mxu0
        %v535 = vadd.f32 %v460, %v534
        %v536 = vpop.f32.mrb[0].mxu0
        %537 = vdwg.mxu0
        %vm538 = vcmask 261120
        %v539 = vsel %vm538, %v530, 0.0
        %540 = vadd.xlane.f32.xlu0 %v539
        %v541 = vpop.xlane.xlu0 %540
        %v542 = vsel %vm538, %v535, 0.0
        %543 = vadd.xlane.f32.xlu0 %v542
        %v544 = vpop.xlane.xlu0 %543
        %v545 = vrcp.pop 32.0
        %v546 = vmul.f32 %v541, %v545
        %v547 = vmul.f32 %v544, %v545
        %v548 = vsub.f32 %v530, %v546
        %v549 = vsub.f32 %v535, %v547
        %v550 = vmul.f32 %v548, %v548
        %v551 = vmul.f32 %v549, %v549
        %v552 = vsel %vm538, %v550, 0.0
        %553 = vadd.xlane.f32.xlu0 %v552
        %v554 = vpop.xlane.xlu0 %553
        %v555 = vsel %vm538, %v551, 0.0
        %556 = vadd.xlane.f32.xlu0 %v555
        %v557 = vpop.xlane.xlu0 %556
        %v558 = vmul.f32 %v554, %v545
        %v559 = vmul.f32 %v557, %v545
        %v560 = vadd.f32 %v558, 1e-05
        %v561 = vadd.f32 %v559, 1e-05
        %v562 = vrsqrt.pop %v560
        %v563 = vrsqrt.pop %v561
        %v564 = vmul.f32 %v548, %v562
        %v565 = vmul.f32 %v549, %v563
        %v566 = vld [vmem:[#allocation8] sm:$0x1]
        %v568 = vlaneseq
        %v569 = vshrl.u32 %v568, 7
        %v570 = vsub.s32 0, %v569
        %v571 = vrot.slane %v566, %v570
        %v573 = vmul.f32 %v564, %v571
        %v574 = vmul.f32 %v565, %v571
        %v575 = vld [vmem:[#allocation10] sm:$0x1]
        %v577 = vlaneseq
        %v578 = vshrl.u32 %v577, 7
        %v579 = vsub.s32 0, %v578
        %v580 = vrot.slane %v575, %v579
        %v582 = vadd.f32 %v573, %v580
        %v583 = vadd.f32 %v574, %v580
        %v584 = vmul.f32 %v582, 0.5
        %v585 = vmul.f32 %v583, 0.5
        %v586 = vmul.f32 %v582, 0.70710677
        %v587 = vmul.f32 %v583, 0.70710677
        %v588 = verf.f32.pop %v586
        %v589 = verf.f32.pop %v587
        %v590 = vadd.f32 %v588, 1.0
        %v591 = vadd.f32 %v589, 1.0
        %v592 = vmul.f32 %v584, %v590
        %v593 = vmul.f32 %v585, %v591
        %594 = vst.msk [vmem:[%s313] sm:$0xff] %vm538, %v592
        %595 = vst.msk [vmem:[%s313 + $0x8] sm:$0xff] %vm538, %v593
        %s596 = sand.u32 %s158, 1
        %s597 = scalar_lea.sflag [#allocation4], %s596
        %s598 = sand.u32 %s158, 1
        %s599 = smul.addr %s598, 16
        %s600 = scalar_lea.vmem [#allocation11], %s599
        // Predicated region
        $region61: #{cnn_embed_forward.1} parent=39 // pred_check
          %p601 = pneg %p168
        $region62: #{cnn_embed_forward.1} parent=39 // pred_check_branch
          %603 = sbr.rel (%p601) target = $region64
        $region63: #{cnn_embed_forward.1} parent=39 // pred_region
          %s604 = smul.u32 2, %s29
          %s606 = ssub.s32 256, 256
          %607 = vsyncadd %s597, %s606
          %s608 = smul.addr %s28, 2
          %s609 = sadd.s32 %s604, %s608
          %s610 = smul.addr %s609, 128
          %s611 = scalar_lea.hbm %s5, %s610
          %s612 = sshll.u32 %s600, 4
          %s613 = int_to_ptr.vmem [resolvable:$true] %s612
          %618 = dma.vmem_to_hbm [thread:$0]  %s613, 256, %s611, %s597, 128, 128, 8
        $region64: #{cnn_embed_forward.1} parent=39 // pred_fallthru
          _
      $region40: #{cnn_embed_forward.1} parent=5 // pred_fallthru
        _
      %p619 = scmp.le.s32.totalorder 2, %s19
      // Predicated region
      $region65: #{cnn_embed_forward.1} parent=5 // pred_check
        %p620 = pneg %p619
      $region66: #{cnn_embed_forward.1} parent=5 // pred_check_branch
        %622 = sbr.rel (%p620) target = $region68
      $region67: #{cnn_embed_forward.1} parent=5 // pred_region
        %s623 = ssub.s32 %s19, 2
        // Predicated region
        $region69: #{cnn_embed_forward.1} parent=67 // pred_check
          %p624 = pneg %p174
        $region70: #{cnn_embed_forward.1} parent=67 // pred_check_branch
          %626 = sbr.rel (%p624) target = $region72
        $region71: #{cnn_embed_forward.1} parent=67 // pred_region
          %s627 = sand.u32 %s159, 1
          %s628 = scalar_lea.sflag [#allocation4], %s627
          %s629 = sand.u32 %s159, 1
          %s630 = smul.addr %s629, 16
          %s631 = scalar_lea.vmem [#allocation11], %s630
          %632 = dma.done %s628, 256
        $region72: #{cnn_embed_forward.1} parent=67 // pred_fallthru
          _
      $region68: #{cnn_embed_forward.1} parent=5 // pred_fallthru
        _
    $region6: #{cnn_embed_forward.1} parent=1 // loop_footer
      %s23 = sadd.s32 1, %s19
    $region7: #{cnn_embed_forward.1} parent=1 // loop_footer_branch
      %18 = sbr.rel target = $region3
    $region8: #{cnn_embed_forward.1} parent=1 // loop_exit
      _
    %633 = vsyncpa [#allocation3], 1
    %s634 = scalar_lea.sflag [#allocation3], 1
    %635 = vsyncpa %s634, 1
    %636 = vsyncpa [#allocation6], 1
    %637 = vsyncpa [#allocation9], 1
    %638 = vsyncpa [#allocation4], 1
    %s639 = scalar_lea.sflag [#allocation4], 1
    %640 = vsyncpa %s639, 1

</llo_original>
